<compile_context>
chip_gen: v7x
topology: tpu7x:2x2x1
jax: 0.10.0
libtpu: 0.0.40
codegen_flags: <defaults>
</compile_context>

<pallas_src>
import numpy as np
import jax
import jax.numpy as jnp
from jax.experimental import pallas as pl
from jax.experimental.pallas import tpu as pltpu


# ---------------------------------------------------------------------------
# Pallas kernel
# ---------------------------------------------------------------------------
def _gram_loss_kernel(x_ref, t_ref, o_ref, gx_ref, gt_ref):
    """Grid = (batch, hw_tiles).  Accumulate both Gram matrices over the HW axis
    in VMEM scratch; at the last HW tile emit sum(|G_in - G_tgt|) for this batch."""
    k = pl.program_id(1)

    @pl.when(k == 0)
    def _init():
        gx_ref[...] = jnp.zeros_like(gx_ref)
        gt_ref[...] = jnp.zeros_like(gt_ref)

    # (C_pad, tk) blocks; bf16 inputs, f32 accumulation on the MXU.
    xb = x_ref[0].astype(jnp.bfloat16)
    tb = t_ref[0].astype(jnp.bfloat16)
    dims = (((1,), (1,)), ((), ()))  # contract HW axis of both operands: X @ X.T
    gx_ref[...] += jax.lax.dot_general(xb, xb, dims,
                                       preferred_element_type=jnp.float32)
    gt_ref[...] += jax.lax.dot_general(tb, tb, dims,
                                       preferred_element_type=jnp.float32)

    @pl.when(k == pl.num_programs(1) - 1)
    def _finalize():
        s = jnp.sum(jnp.abs(gx_ref[...] - gt_ref[...]))
        # Lane-dense (1, 8, 128) output block; wrapper reads [:, 0, 0].
        o_ref[...] = jnp.broadcast_to(s, o_ref.shape).astype(o_ref.dtype)


# ---------------------------------------------------------------------------
# Wrapper
# ---------------------------------------------------------------------------
def _round_up(x, m):
    return ((x + m - 1) // m) * m


def _choose_hw_tile(hw, c_pad):
    # Budget: 2 inputs * 2 pipeline buffers * (c_pad * tk * 4 B) <= ~8 MiB, which
    # leaves ample headroom under v7x's 32 MiB scoped / 64 MiB physical VMEM.
    budget = 8 * 1024 * 1024
    max_tk = budget // (2 * 2 * c_pad * 4)
    max_tk = max(128, (max_tk // 128) * 128)
    return min(max_tk, 2048, _round_up(hw, 128))


def gram_loss(inp, tgt):
    """L1 loss between per-sample Gram matrices of `inp` and `tgt` (any rank >= 2,
    both shaped (B, C, *spatial)).  Returns a scalar (mean reduction)."""
    assert inp.shape == tgt.shape, (inp.shape, tgt.shape)
    b, c = int(inp.shape[0]), int(inp.shape[1])
    hw = 1
    for d in inp.shape[2:]:
        hw *= int(d)

    x = inp.reshape(b, c, hw).astype(jnp.float32)
    t = tgt.reshape(b, c, hw).astype(jnp.float32)

    c_pad = _round_up(c, 8)                    # sublane alignment
    tk = _choose_hw_tile(hw, c_pad)            # lane-aligned HW tile
    hw_pad = _round_up(hw, tk)

    if c_pad != c or hw_pad != hw:
        # Zero padding leaves X @ X.T (and the abs-diff sum) unchanged.
        x = jnp.pad(x, ((0, 0), (0, c_pad - c), (0, hw_pad - hw)))
        t = jnp.pad(t, ((0, 0), (0, c_pad - c), (0, hw_pad - hw)))

    n_k = hw_pad // tk

    partial = pl.pallas_call(
        _gram_loss_kernel,
        out_shape=jax.ShapeDtypeStruct((b, 8, 128), jnp.float32),
        grid_spec=pltpu.PrefetchScalarGridSpec(
            num_scalar_prefetch=0,
            grid=(b, n_k),
            in_specs=[
                pl.BlockSpec((1, c_pad, tk), lambda i, k: (i, 0, k)),
                pl.BlockSpec((1, c_pad, tk), lambda i, k: (i, 0, k)),
            ],
            out_specs=pl.BlockSpec((1, 8, 128), lambda i, k: (i, 0, 0)),
            scratch_shapes=[
                pltpu.VMEM((c_pad, c_pad), jnp.float32),   # Gram(input) accumulator
                pltpu.VMEM((c_pad, c_pad), jnp.float32),   # Gram(target) accumulator
            ],
        ),
        compiler_params=pltpu.CompilerParams(
            dimension_semantics=("parallel", "arbitrary"),
            vmem_limit_bytes=32 * 1024 * 1024,
        ),
    )(x, t)

    # partial[b, 0, 0] = sum_{i,j} |G_in[b] - G_tgt[b]|; finish the mean here.
    return jnp.sum(partial[:, 0, 0]) / float(b * c * c)


# ---------------------------------------------------------------------------
if __name__ == "__main__":
    key = jax.random.PRNGKey(0)
    k1, k2 = jax.random.split(key)

    B, C, H, W = 2, 4, 16, 16
    inp = jax.random.normal(k1, (B, C, H, W), jnp.float32)
    tgt = jax.random.normal(k2, (B, C, H, W), jnp.float32)

    loss = jax.jit(gram_loss)(inp, tgt)
    loss = jax.block_until_ready(loss)

    # float64 host reference
    xi = np.asarray(inp, np.float64).reshape(B, C, -1)
    xt = np.asarray(tgt, np.float64).reshape(B, C, -1)
    gi = xi @ np.transpose(xi, (0, 2, 1))
    gt = xt @ np.transpose(xt, (0, 2, 1))
    ref = np.mean(np.abs(gi - gt))

    assert np.isfinite(float(loss)), float(loss)
    np.testing.assert_allclose(float(loss), ref, rtol=2e-2, atol=1e-2)
    print("KERNEL_OK")
</pallas_src>

<mosaic_0001>
module attributes {stable_mosaic.version = 11 : i64} {
  func.func @_gram_loss_kernel(%arg0: i32, %arg1: i32, %arg2: memref<1x8x256xf32, #tpu.memory_space<vmem>>, %arg3: memref<1x8x256xf32, #tpu.memory_space<vmem>>, %arg4: memref<1x8x128xf32, #tpu.memory_space<vmem>>, %arg5: memref<8x8xf32, #tpu.memory_space<vmem>>, %arg6: memref<8x8xf32, #tpu.memory_space<vmem>>) attributes {dimension_semantics = [#tpu.dimension_semantics<parallel>, #tpu.dimension_semantics<arbitrary>], iteration_bounds = array<i64: 2, 1>, scalar_prefetch = 0 : i64, scratch_operands = 2 : i64, tpu.core_type = #tpu.core_type<tc>, window_params = [{transform_indices = @transform_0, window_bounds = array<i64: 1, 8, 256>}, {transform_indices = @transform_1, window_bounds = array<i64: 1, 8, 256>}, {transform_indices = @transform_2, window_bounds = array<i64: 1, 8, 128>}]} {
    %c0_i32 = arith.constant 0 : i32
    %0 = arith.cmpi eq, %arg1, %c0_i32 : i32
    %1 = arith.extui %0 : i1 to i32
    %c0_i32_0 = arith.constant 0 : i32
    %2 = arith.cmpi ne, %1, %c0_i32_0 : i32
    scf.if %2 {
      %cst_17 = arith.constant 0.000000e+00 : f32
      %20 = vector.broadcast %cst_17 : f32 to vector<8x8xf32>
      %c0_18 = arith.constant 0 : index
      %c0_19 = arith.constant 0 : index
      %21 = vector.load %arg5[%c0_18, %c0_19] : memref<8x8xf32, #tpu.memory_space<vmem>>, vector<8x8xf32>
      tpu.vector_store %arg5[%c0_18, %c0_19], %20 {strides = array<i32>} : memref<8x8xf32, #tpu.memory_space<vmem>>, vector<8x8xf32>,
      %cst_20 = arith.constant 0.000000e+00 : f32
      %22 = vector.broadcast %cst_20 : f32 to vector<8x8xf32>
      %c0_21 = arith.constant 0 : index
      %c0_22 = arith.constant 0 : index
      %23 = vector.load %arg6[%c0_21, %c0_22] : memref<8x8xf32, #tpu.memory_space<vmem>>, vector<8x8xf32>
      tpu.vector_store %arg6[%c0_21, %c0_22], %22 {strides = array<i32>} : memref<8x8xf32, #tpu.memory_space<vmem>>, vector<8x8xf32>,
    } else {
    }
    %c0 = arith.constant 0 : index
    %c0_1 = arith.constant 0 : index
    %c0_2 = arith.constant 0 : index
    %3 = vector.load %arg2[%c0, %c0_1, %c0_2] : memref<1x8x256xf32, #tpu.memory_space<vmem>>, vector<1x8x256xf32>
    %4 = vector.shape_cast %3 : vector<1x8x256xf32> to vector<8x256xf32>
    %5 = arith.truncf %4 : vector<8x256xf32> to vector<8x256xbf16>
    %c0_3 = arith.constant 0 : index
    %c0_4 = arith.constant 0 : index
    %c0_5 = arith.constant 0 : index
    %6 = vector.load %arg3[%c0_3, %c0_4, %c0_5] : memref<1x8x256xf32, #tpu.memory_space<vmem>>, vector<1x8x256xf32>
    %7 = vector.shape_cast %6 : vector<1x8x256xf32> to vector<8x256xf32>
    %8 = arith.truncf %7 : vector<8x256xf32> to vector<8x256xbf16>
    %c0_6 = arith.constant 0 : index
    %c0_7 = arith.constant 0 : index
    %9 = vector.load %arg5[%c0_6, %c0_7] : memref<8x8xf32, #tpu.memory_space<vmem>>, vector<8x8xf32>
    %cst = arith.constant dense<0.000000e+00> : vector<8x8xf32>
    %10 = tpu.matmul %5, %5, %cst {dimension_numbers = #tpu.dot_dimension_numbers<[1], [1], [0], [0], [0, 0, 1, 0], [], []>} : vector<8x256xbf16>, vector<8x256xbf16>, vector<8x8xf32> -> vector<8x8xf32>
    %11 = arith.addf %9, %10 : vector<8x8xf32>
    %c0_8 = arith.constant 0 : index
    %c0_9 = arith.constant 0 : index
    %12 = vector.load %arg5[%c0_8, %c0_9] : memref<8x8xf32, #tpu.memory_space<vmem>>, vector<8x8xf32>
    tpu.vector_store %arg5[%c0_8, %c0_9], %11 {strides = array<i32>} : memref<8x8xf32, #tpu.memory_space<vmem>>, vector<8x8xf32>,
    %c0_10 = arith.constant 0 : index
    %c0_11 = arith.constant 0 : index
    %13 = vector.load %arg6[%c0_10, %c0_11] : memref<8x8xf32, #tpu.memory_space<vmem>>, vector<8x8xf32>
    %cst_12 = arith.constant dense<0.000000e+00> : vector<8x8xf32>
    %14 = tpu.matmul %8, %8, %cst_12 {dimension_numbers = #tpu.dot_dimension_numbers<[1], [1], [0], [0], [0, 0, 1, 0], [], []>} : vector<8x256xbf16>, vector<8x256xbf16>, vector<8x8xf32> -> vector<8x8xf32>
    %15 = arith.addf %13, %14 : vector<8x8xf32>
    %c0_13 = arith.constant 0 : index
    %c0_14 = arith.constant 0 : index
    %16 = vector.load %arg6[%c0_13, %c0_14] : memref<8x8xf32, #tpu.memory_space<vmem>>, vector<8x8xf32>
    tpu.vector_store %arg6[%c0_13, %c0_14], %15 {strides = array<i32>} : memref<8x8xf32, #tpu.memory_space<vmem>>, vector<8x8xf32>,
    %c0_i32_15 = arith.constant 0 : i32
    %17 = arith.cmpi eq, %arg1, %c0_i32_15 : i32
    %18 = arith.extui %17 : i1 to i32
    %c0_i32_16 = arith.constant 0 : i32
    %19 = arith.cmpi ne, %18, %c0_i32_16 : i32
    scf.if %19 {
      %c0_17 = arith.constant 0 : index
      %c0_18 = arith.constant 0 : index
      %20 = vector.load %arg5[%c0_17, %c0_18] : memref<8x8xf32, #tpu.memory_space<vmem>>, vector<8x8xf32>
      %c0_19 = arith.constant 0 : index
      %c0_20 = arith.constant 0 : index
      %21 = vector.load %arg6[%c0_19, %c0_20] : memref<8x8xf32, #tpu.memory_space<vmem>>, vector<8x8xf32>
      %22 = arith.subf %20, %21 : vector<8x8xf32>
      %23 = math.absf %22 : vector<8x8xf32>
      %24 = vector.shape_cast %23 : vector<8x8xf32> to vector<1x8x8xf32>
      %cst_21 = arith.constant dense<0.000000e+00> : vector<1xf32>
      %25 = vector.multi_reduction <add>, %24, %cst_21 [1, 2] : vector<1x8x8xf32> to vector<1xf32>
      %26 = vector.shape_cast %25 : vector<1xf32> to vector<1x1x1xf32>
      %27 = vector.extract %26[0, 0, 0] : f32 from vector<1x1x1xf32>
      %28 = vector.broadcast %27 : f32 to vector<1x8x128xf32>
      %c0_22 = arith.constant 0 : index
      %c0_23 = arith.constant 0 : index
      %c0_24 = arith.constant 0 : index
      %29 = vector.load %arg4[%c0_22, %c0_23, %c0_24] : memref<1x8x128xf32, #tpu.memory_space<vmem>>, vector<1x8x128xf32>
      tpu.vector_store %arg4[%c0_22, %c0_23, %c0_24], %28 {strides = array<i32>} : memref<1x8x128xf32, #tpu.memory_space<vmem>>, vector<1x8x128xf32>,
    } else {
    }
    return
  }
  func.func @transform_0(%arg0: i32, %arg1: i32) -> (i32, i32, i32) {
    %c0_i32 = arith.constant 0 : i32
    %c0_i32_0 = arith.constant 0 : i32
    return %arg0, %c0_i32, %arg1 : i32, i32, i32
  }
  func.func @transform_1(%arg0: i32, %arg1: i32) -> (i32, i32, i32) {
    %c0_i32 = arith.constant 0 : i32
    %c0_i32_0 = arith.constant 0 : i32
    return %arg0, %c0_i32, %arg1 : i32, i32, i32
  }
  func.func @transform_2(%arg0: i32, %arg1: i32) -> (i32, i32, i32) {
    %c0_i32 = arith.constant 0 : i32
    %c0_i32_0 = arith.constant 0 : i32
    %c0_i32_1 = arith.constant 0 : i32
    return %arg0, %c0_i32, %c0_i32_0 : i32, i32, i32
  }
}

</mosaic_0001>

<llo_original>
// kernel: gram_loss.1
$region0: #{gram_loss.1}
  #allocation0 [shape = 'u32[]', space=smem, size = 0x4, offset = 0x4, fixed_abs, tag = 'smem constant byte address 0x4 - core index']
  #allocation1 [shape = 'u32[144,128]{1,0:T(1,128)}', space=vmem, size = 0x12000, scoped, tag = 'internal scratch']
  #allocation2 [shape = 'f32[8,8]{1,0:T(8,128)}', space=vmem, size = 0x1000, scoped, tag = 'scratch operand']
  #allocation3 [shape = 'f32[8,8]{1,0:T(8,128)}', space=vmem, size = 0x1000, scoped, tag = 'scratch operand']
  %s0 = inlined_call_operand.vmem [shape: f32[2,8,256], index: 0, kind: input, shape index: {}]
  %s1 = inlined_call_operand.vmem [shape: f32[2,8,256], index: 1, kind: input, shape index: {}]
  %s2 = inlined_call_operand.vmem [shape: f32[2,8,128], index: 2, kind: output, shape index: {}]
  %s3 = sld [smem:[#allocation0]]
  $region49: #{gram_loss.1} parent=0
    _
  %s5 = ssub.s32 1, %s3
  %s6 = scalar_select 0, %s5, %s3
  loop: start=0, step=1, limit=4
  $region2: #{gram_loss.1} parent=0 // loop_pre_header
    _
  $region3: #{gram_loss.1} parent=0 // loop_header
    %s8 = sphi 0, %s12
    %p9 = scmp.ge.s32.totalorder %s8, 4
    %s15 = sphi 0, %s27
    %s16 = sphi 0, %s23
    %s17 = sphi 0, %s15
    %s18 = sphi 0, %s16
    %s19 = sphi 0, %s17
    %s20 = sphi 0, %s18
    %s32 = sphi 0, %s34
    %s35 = sphi 0, %s32
    %s36 = sphi 0, %s35
    %s52 = sphi 0, %s36
    %s60 = sphi 0, %s62
    %s63 = sphi 0, %s60
    %s64 = sphi 0, %s63
    %s80 = sphi 0, %s64
    %s86 = sphi 0, %s88
    %s89 = sphi 0, %s86
    %s90 = sphi 0, %s89
    %s106 = sphi 0, %s90
  $region4: #{gram_loss.1} parent=0 // loop_header_branch
    %11 = sbr.rel (%p9) target = $region8
  $region5: #{gram_loss.1} parent=0 // loop_body
    %s13 = ssub.s32 %s8, 1
    %s14 = ssub.s32 %s8, 2
    %s21 = sadd.s32 1, %s16
    %p22 = scmp.ge.s32.totalorder %s21, 1
    %s23 = scalar_select %p22, 0, %s21
    %s24 = sadd.s32 1, %s15
    %s25 = scalar_select %p22, %s24, %s15
    %p26 = scmp.ge.s32.totalorder %s25, 2
    %s27 = scalar_select %p26, 0, %s25
    %s28 = ssub.s32 %s15, %s27
    %s29 = ssub.s32 %s16, %s23
    %s30 = sor.u32 %s28, %s29
    %p31 = scmp.eq.s32.totalorder %s30, 0
    %s33 = sadd.s32 %s32, 1
    %s34 = scalar_select %p31, %s32, %s33
    %p37 = pneg %p31
    %p38 = scmp.eq.s32.totalorder %s8, 1
    %p39 = por %p37, %p38
    %p40 = scmp.ne.s32.totalorder %s32, %s35
    %p41 = scmp.eq.s32.totalorder %s8, 0
    %p42 = por %p40, %p41
    %p43 = scmp.ne.s32.totalorder %s32, %s35
    %p44 = scmp.eq.s32.totalorder %s13, 1
    %p45 = por %p43, %p44
    %p46 = scmp.ne.s32.totalorder %s35, %s36
    %p47 = scmp.eq.s32.totalorder %s13, 0
    %p48 = por %p46, %p47
    %p49 = scmp.ne.s32.totalorder %s35, %s36
    %p50 = scmp.eq.s32.totalorder %s14, 1
    %p51 = por %p49, %p50
    %p53 = scmp.ne.s32.totalorder %s36, %s52
    %p54 = scmp.eq.s32.totalorder %s14, 0
    %p55 = por %p53, %p54
    %s56 = ssub.s32 %s15, %s27
    %s57 = ssub.s32 %s16, %s23
    %s58 = sor.u32 %s56, %s57
    %p59 = scmp.eq.s32.totalorder %s58, 0
    %s61 = sadd.s32 %s60, 1
    %s62 = scalar_select %p59, %s60, %s61
    %p65 = pneg %p59
    %p66 = scmp.eq.s32.totalorder %s8, 1
    %p67 = por %p65, %p66
    %p68 = scmp.ne.s32.totalorder %s60, %s63
    %p69 = scmp.eq.s32.totalorder %s8, 0
    %p70 = por %p68, %p69
    %p71 = scmp.ne.s32.totalorder %s60, %s63
    %p72 = scmp.eq.s32.totalorder %s13, 1
    %p73 = por %p71, %p72
    %p74 = scmp.ne.s32.totalorder %s63, %s64
    %p75 = scmp.eq.s32.totalorder %s13, 0
    %p76 = por %p74, %p75
    %p77 = scmp.ne.s32.totalorder %s63, %s64
    %p78 = scmp.eq.s32.totalorder %s14, 1
    %p79 = por %p77, %p78
    %p81 = scmp.ne.s32.totalorder %s64, %s80
    %p82 = scmp.eq.s32.totalorder %s14, 0
    %p83 = por %p81, %p82
    %s84 = ssub.s32 %s15, %s27
    %p85 = scmp.eq.s32.totalorder %s84, 0
    %s87 = sadd.s32 %s86, 1
    %s88 = scalar_select %p85, %s86, %s87
    %p91 = pneg %p85
    %p92 = scmp.eq.s32.totalorder %s8, 1
    %p93 = por %p91, %p92
    %p94 = scmp.ne.s32.totalorder %s86, %s89
    %p95 = scmp.eq.s32.totalorder %s8, 0
    %p96 = por %p94, %p95
    %p97 = scmp.ne.s32.totalorder %s86, %s89
    %p98 = scmp.eq.s32.totalorder %s13, 1
    %p99 = por %p97, %p98
    %p100 = scmp.ne.s32.totalorder %s89, %s90
    %p101 = scmp.eq.s32.totalorder %s13, 0
    %p102 = por %p100, %p101
    %p103 = scmp.ne.s32.totalorder %s89, %s90
    %p104 = scmp.eq.s32.totalorder %s14, 1
    %p105 = por %p103, %p104
    %p107 = scmp.ne.s32.totalorder %s90, %s106
    %p108 = scmp.eq.s32.totalorder %s14, 0
    %p109 = por %p107, %p108
    %p110 = scmp.le.s32.totalorder 1, %s8
    %p111 = scmp.lt.s32.totalorder %s8, 3
    %p112 = pnand %p110, %p111
    %p113 = pneg %p112
    // Predicated region
    $region9: #{gram_loss.1} parent=5 // pred_check
      _
    $region10: #{gram_loss.1} parent=5 // pred_check_branch
      %115 = sbr.rel (%p112) target = $region12
    $region11: #{gram_loss.1} parent=5 // pred_region
      %s116 = ssub.s32 %s8, 1
    $region12: #{gram_loss.1} parent=5 // pred_fallthru
      _
    %p117 = scmp.lt.s32.totalorder %s8, 2
    // Predicated region
    $region13: #{gram_loss.1} parent=5 // pred_check
      %p118 = pneg %p117
    $region14: #{gram_loss.1} parent=5 // pred_check_branch
      %120 = sbr.rel (%p118) target = $region16
    $region15: #{gram_loss.1} parent=5 // pred_region
      // Predicated region
      $region17: #{gram_loss.1} parent=15 // pred_check
        %p121 = pneg %p42
      $region18: #{gram_loss.1} parent=15 // pred_check_branch
        %123 = sbr.rel (%p121) target = $region20
      $region19: #{gram_loss.1} parent=15 // pred_region
        %s124 = smul.u32 2, %s16
        %p125 = scmp.lt.s32.totalorder %s15, 1
        %s126 = scalar_select %p125, %s15, 1
        %p127 = scmp.lt.s32.totalorder %s124, 1
        %s128 = scalar_select %p127, %s124, 1
        %s129 = smul.addr %s126, 2
        %s130 = sadd.s32 %s128, %s129
        %s131 = smul.addr %s130, 8
        %s132 = scalar_lea.vmem %s0, %s131
        %s133 = smul.u32 2, %s16
      $region20: #{gram_loss.1} parent=15 // pred_fallthru
        _
      // Predicated region
      $region21: #{gram_loss.1} parent=15 // pred_check
        %p134 = pneg %p70
      $region22: #{gram_loss.1} parent=15 // pred_check_branch
        %136 = sbr.rel (%p134) target = $region24
      $region23: #{gram_loss.1} parent=15 // pred_region
        %s137 = smul.u32 2, %s16
        %p138 = scmp.lt.s32.totalorder %s15, 1
        %s139 = scalar_select %p138, %s15, 1
        %p140 = scmp.lt.s32.totalorder %s137, 1
        %s141 = scalar_select %p140, %s137, 1
        %s142 = smul.addr %s139, 2
        %s143 = sadd.s32 %s141, %s142
        %s144 = smul.addr %s143, 8
        %s145 = scalar_lea.vmem %s1, %s144
        %s146 = smul.u32 2, %s16
      $region24: #{gram_loss.1} parent=15 // pred_fallthru
        _
    $region16: #{gram_loss.1} parent=5 // pred_fallthru
      _
    %p147 = scmp.le.s32.totalorder 1, %s8
    %p148 = scmp.lt.s32.totalorder %s8, 3
    %p149 = pnand %p147, %p148
    %p150 = pneg %p149
    // Predicated region
    $region25: #{gram_loss.1} parent=5 // pred_check
      _
    $region26: #{gram_loss.1} parent=5 // pred_check_branch
      %152 = sbr.rel (%p149) target = $region28
    $region27: #{gram_loss.1} parent=5 // pred_region
      %s153 = ssub.s32 %s8, 1
      %s154 = smul.u32 2, %s18
      %p155 = scmp.lt.s32.totalorder %s17, 1
      %s156 = scalar_select %p155, %s17, 1
      %p157 = scmp.lt.s32.totalorder %s154, 1
      %s158 = scalar_select %p157, %s154, 1
      %s159 = smul.addr %s156, 2
      %s160 = sadd.s32 %s158, %s159
      %s161 = smul.addr %s160, 8
      %s162 = scalar_lea.vmem %s0, %s161
      %p163 = pneg %p48
      %p164 = pneg %p45
      %s165 = smul.u32 2, %s18
      %p166 = scmp.lt.s32.totalorder %s17, 1
      %s167 = scalar_select %p166, %s17, 1
      %p168 = scmp.lt.s32.totalorder %s165, 1
      %s169 = scalar_select %p168, %s165, 1
      %s170 = smul.addr %s167, 2
      %s171 = sadd.s32 %s169, %s170
      %s172 = smul.addr %s171, 8
      %s173 = scalar_lea.vmem %s1, %s172
      %p174 = pneg %p76
      %p175 = pneg %p73
      %p176 = pneg %p102
      %p177 = pneg %p99
      %p178 = scmp.lt.s32.totalorder %s17, 1
      %s179 = scalar_select %p178, %s17, 1
      %s180 = smul.addr %s179, 8
      %s181 = scalar_lea.vmem %s2, %s180
      %s182 = smul.u32 2, %s18
      %p183 = scmp.lt.s32.totalorder %s17, 1
      %s184 = scalar_select %p183, %s17, 1
      %p185 = scmp.lt.s32.totalorder %s182, 1
      %s186 = scalar_select %p185, %s182, 1
      %s187 = smul.addr %s184, 2
      %s188 = sadd.s32 %s186, %s187
      %s189 = smul.addr %s188, 8
      %s190 = scalar_lea.vmem %s0, %s189
      %s191 = smul.u32 2, %s18
      %s192 = smul.u32 2, %s18
      %p193 = scmp.lt.s32.totalorder %s17, 1
      %s194 = scalar_select %p193, %s17, 1
      %p195 = scmp.lt.s32.totalorder %s192, 1
      %s196 = scalar_select %p195, %s192, 1
      %s197 = smul.addr %s194, 2
      %s198 = sadd.s32 %s196, %s197
      %s199 = smul.addr %s198, 8
      %s200 = scalar_lea.vmem %s1, %s199
      %s201 = smul.u32 2, %s18
      %p202 = scmp.lt.s32.totalorder %s17, 1
      %s203 = scalar_select %p202, %s17, 1
      %s204 = smul.addr %s203, 8
      %s205 = scalar_lea.vmem %s2, %s204
      %p207 = scmp.eq.s32.totalorder %s18, 0
      // Predicated region
      $region29: #{gram_loss.1} parent=27 // pred_check
        %p208 = pneg %p207
      $region30: #{gram_loss.1} parent=27 // pred_check_branch
        %210 = sbr.rel (%p208) target = $region32
      $region31: #{gram_loss.1} parent=27 // pred_region
        %vm211 = vcmask 64512
        %212 = vst.msk [vmem:[#allocation2] sm:$0xff] %vm211, 0.0
        %213 = vst.msk [vmem:[#allocation3] sm:$0xff] %vm211, 0.0
      $region32: #{gram_loss.1} parent=27 // pred_fallthru
        _
      %v214 = vld [vmem:[%s190] sm:$0xff]
      %v215 = vld [vmem:[%s190 + $0x8] sm:$0xff]
      %v216 = vpack.c.bf16 %v214, %v214
      %v217 = vpack.c.bf16 %v215, %v215
      %v218 = vld [vmem:[%s200] sm:$0xff]
      %v219 = vld [vmem:[%s200 + $0x8] sm:$0xff]
      %v220 = vpack.c.bf16 %v218, %v218
      %v221 = vpack.c.bf16 %v219, %v219
      %v222 = vld [vmem:[#allocation2] sm:$0xff]
      %223 = vmatprep.subr.bf16.mxu0 %v217
      %224 = vmatpush1.bf16.xpose.msra.mxu0 %v216
      %225 = vmatprep.subr.bf16.mxu0 0
      %226 = vmatpush1.bf16.xpose.msra.mxu0 0
      %227 = vmatprep.subr.bf16.mxu0 0
      %228 = vmatpush1.bf16.xpose.msra.mxu0 0
      %229 = vmatprep.subr.bf16.mxu0 0
      %230 = vmatpush1.bf16.xpose.msra.mxu0 0
      %231 = vmatprep.subr.bf16.mxu0 0
      %232 = vmatpush1.bf16.xpose.msra.mxu0 0
      %233 = vmatprep.subr.bf16.mxu0 0
      %234 = vmatpush1.bf16.xpose.msra.mxu0 0
      %235 = vmatprep.subr.bf16.mxu0 0
      %236 = vmatpush1.bf16.xpose.msra.mxu0 0
      %237 = vmatprep.subr.bf16.mxu0 0
      %238 = vmatpush1.bf16.xpose.msra.mxu0 0
      %239 = vmatprep.subr.bf16.mxu0 0
      %240 = vmatpush1.bf16.xpose.msra.mxu0 0
      %241 = vmatprep.subr.bf16.mxu0 0
      %242 = vmatpush1.bf16.xpose.msra.mxu0 0
      %243 = vmatprep.subr.bf16.mxu0 0
      %244 = vmatpush1.bf16.xpose.msra.mxu0 0
      %245 = vmatprep.subr.bf16.mxu0 0
      %246 = vmatpush1.bf16.xpose.msra.mxu0 0
      %247 = vmatprep.subr.bf16.mxu0 0
      %248 = vmatpush1.bf16.xpose.msra.mxu0 0
      %249 = vmatprep.subr.bf16.mxu0 0
      %250 = vmatpush1.bf16.xpose.msra.mxu0 0
      %251 = vmatprep.subr.bf16.mxu0 0
      %252 = vmatpush1.bf16.xpose.msra.mxu0 0
      %253 = vmatprep.subr.bf16.mxu0 0
      %254 = vmatpush1.bf16.xpose.msra.mxu0 0
      %255 = vmatprep.mubr.bf16.mxu0 %v217
      %256 = vmatmul.mubr.bf16.gmra.mrb[0].mxu0 %v216
      %v257 = vpop.f32.mrb[0].mxu0
      %v258 = vadd.f32 0.0, %v257
      %v259 = vpop.f32.mrb[0].mxu0
      %v260 = vpop.f32.mrb[0].mxu0
      %v261 = vpop.f32.mrb[0].mxu0
      %262 = vdwg.mxu0
      %v263 = vadd.f32 %v222, %v258
      %vm264 = vcmask 64512
      %265 = vst.msk [vmem:[#allocation2] sm:$0xff] %vm264, %v263
      %v266 = vld [vmem:[#allocation3] sm:$0xff]
      %267 = vmatprep.subr.bf16.mxu0 %v221
      %268 = vmatpush1.bf16.xpose.msra.mxu0 %v220
      %269 = vmatprep.subr.bf16.mxu0 0
      %270 = vmatpush1.bf16.xpose.msra.mxu0 0
      %271 = vmatprep.subr.bf16.mxu0 0
      %272 = vmatpush1.bf16.xpose.msra.mxu0 0
      %273 = vmatprep.subr.bf16.mxu0 0
      %274 = vmatpush1.bf16.xpose.msra.mxu0 0
      %275 = vmatprep.subr.bf16.mxu0 0
      %276 = vmatpush1.bf16.xpose.msra.mxu0 0
      %277 = vmatprep.subr.bf16.mxu0 0
      %278 = vmatpush1.bf16.xpose.msra.mxu0 0
      %279 = vmatprep.subr.bf16.mxu0 0
      %280 = vmatpush1.bf16.xpose.msra.mxu0 0
      %281 = vmatprep.subr.bf16.mxu0 0
      %282 = vmatpush1.bf16.xpose.msra.mxu0 0
      %283 = vmatprep.subr.bf16.mxu0 0
      %284 = vmatpush1.bf16.xpose.msra.mxu0 0
      %285 = vmatprep.subr.bf16.mxu0 0
      %286 = vmatpush1.bf16.xpose.msra.mxu0 0
      %287 = vmatprep.subr.bf16.mxu0 0
      %288 = vmatpush1.bf16.xpose.msra.mxu0 0
      %289 = vmatprep.subr.bf16.mxu0 0
      %290 = vmatpush1.bf16.xpose.msra.mxu0 0
      %291 = vmatprep.subr.bf16.mxu0 0
      %292 = vmatpush1.bf16.xpose.msra.mxu0 0
      %293 = vmatprep.subr.bf16.mxu0 0
      %294 = vmatpush1.bf16.xpose.msra.mxu0 0
      %295 = vmatprep.subr.bf16.mxu0 0
      %296 = vmatpush1.bf16.xpose.msra.mxu0 0
      %297 = vmatprep.subr.bf16.mxu0 0
      %298 = vmatpush1.bf16.xpose.msra.mxu0 0
      %299 = vmatprep.mubr.bf16.mxu0 %v221
      %300 = vmatmul.mubr.bf16.gmra.mrb[0].mxu0 %v220
      %v301 = vpop.f32.mrb[0].mxu0
      %v302 = vadd.f32 0.0, %v301
      %v303 = vpop.f32.mrb[0].mxu0
      %v304 = vpop.f32.mrb[0].mxu0
      %v305 = vpop.f32.mrb[0].mxu0
      %306 = vdwg.mxu0
      %v307 = vadd.f32 %v266, %v302
      %308 = vst.msk [vmem:[#allocation3] sm:$0xff] %vm264, %v307
      // Predicated region
      $region33: #{gram_loss.1} parent=27 // pred_check
        %p309 = pneg %p207
      $region34: #{gram_loss.1} parent=27 // pred_check_branch
        %311 = sbr.rel (%p309) target = $region36
      $region35: #{gram_loss.1} parent=27 // pred_region
        %v312 = vld [vmem:[#allocation2] sm:$0xff]
        %v313 = vld [vmem:[#allocation3] sm:$0xff]
        %v314 = vsub.f32 %v312, %v313
        %v315 = vand.u32 2147483647, %v314
        %v316 = vsel %vm264, %v315, 0.0
        %317 = vadd.xlane.f32.xlu0 %v316
        %v318 = vpop.xlane.xlu0 %317
        %v319 = vrot.slane %v318, 4
        %v320 = vadd.f32 %v318, %v319
        %v321 = vrot.slane %v320, 2
        %v322 = vadd.f32 %v320, %v321
        %v323 = vrot.slane %v322, 1
        %v324 = vadd.f32 %v322, %v323
        %s325 = vtos %v324
        %v326 = vstv %s325
        %327 = vst [vmem:[%s205] sm:$0xff] %v326
      $region36: #{gram_loss.1} parent=27 // pred_fallthru
        _
      %p328 = scmp.lt.s32.totalorder %s17, 1
      %s329 = scalar_select %p328, %s17, 1
      %s330 = smul.addr %s329, 8
      %s331 = scalar_lea.vmem %s2, %s330
      // Predicated region
      $region37: #{gram_loss.1} parent=27 // pred_check
        %p332 = pneg %p99
      $region38: #{gram_loss.1} parent=27 // pred_check_branch
        %334 = sbr.rel (%p332) target = $region40
      $region39: #{gram_loss.1} parent=27 // pred_region
        _
      $region40: #{gram_loss.1} parent=27 // pred_fallthru
        _
    $region28: #{gram_loss.1} parent=5 // pred_fallthru
      _
    %p335 = scmp.le.s32.totalorder 2, %s8
    // Predicated region
    $region41: #{gram_loss.1} parent=5 // pred_check
      %p336 = pneg %p335
    $region42: #{gram_loss.1} parent=5 // pred_check_branch
      %338 = sbr.rel (%p336) target = $region44
    $region43: #{gram_loss.1} parent=5 // pred_region
      %s339 = ssub.s32 %s8, 2
      // Predicated region
      $region45: #{gram_loss.1} parent=43 // pred_check
        %p340 = pneg %p105
      $region46: #{gram_loss.1} parent=43 // pred_check_branch
        %342 = sbr.rel (%p340) target = $region48
      $region47: #{gram_loss.1} parent=43 // pred_region
        %p343 = scmp.lt.s32.totalorder %s19, 1
        %s344 = scalar_select %p343, %s19, 1
        %s345 = smul.addr %s344, 8
        %s346 = scalar_lea.vmem %s2, %s345
      $region48: #{gram_loss.1} parent=43 // pred_fallthru
        _
    $region44: #{gram_loss.1} parent=5 // pred_fallthru
      _
  $region6: #{gram_loss.1} parent=0 // loop_footer
    %s12 = sadd.s32 1, %s8
  $region7: #{gram_loss.1} parent=0 // loop_footer_branch
    %7 = sbr.rel target = $region3
  $region8: #{gram_loss.1} parent=0 // loop_exit
    _

</llo_original>
